<compile_context>
chip_gen: v5e
topology: v5e:2x2
jax: 0.10.0
libtpu: 0.0.40
codegen_flags: <defaults>
</compile_context>

<pallas_src>
from typing import Any, NamedTuple

import jax
import jax.numpy as jnp
from jax.experimental import pallas as pl
from jax.experimental.pallas import tpu as pltpu


# --------------------------------------------------------------------------- #
# Kernel
# --------------------------------------------------------------------------- #
def _gconv_bn_relu_kernel(x_ref, w_ref, adj_ref, diag_ref, shift_ref, o_ref):
    """One batch tile of TB graphs; TB*N_pad rows folded into the MXU M dim."""
    cpad = o_ref.shape[-1]                 # lane-padded Cout (multiple of 128)
    x = x_ref[...]                                                   # (M, Cin)
    # Single MXU matmul against the concatenated, BN-scale-folded weights.
    h = jnp.dot(x, w_ref[...], preferred_element_type=jnp.float32)  # (M, 2*cpad)
    h0 = h[:, :cpad]       # x @ (W0*bn_scale)  -- slice at a 128-lane boundary
    h1 = h[:, cpad:]       # x @ (W1*bn_scale)  -- slice at a 128-lane boundary
    # (A o I) is diagonal -> elementwise (M,1) row scale on the VPU (f32).
    y = diag_ref[...] * h0
    # Block-diagonal kron(I_TB, A_off): one 2-D MXU matmul mixes nodes for the
    # whole batch tile.
    y = y + jnp.dot(adj_ref[...], h1.astype(adj_ref.dtype),
                    preferred_element_type=jnp.float32)
    y = y + shift_ref[...]                 # BN shift + folded gconv bias (f32)
    o_ref[...] = jnp.maximum(y, 0.0).astype(o_ref.dtype)            # ReLU


# --------------------------------------------------------------------------- #
# Parameter-only preprocessing (hoisted out of the per-forward hot path)
# --------------------------------------------------------------------------- #
def _round_up(x, m):
    return ((x + m - 1) // m) * m


def _device_kind():
    try:
        return jax.devices()[0].device_kind.lower()
    except Exception:
        return ""


def _default_rows_target(kind):
    # v6e / v7x MXU is 2x256^2 -> 256-row tiles; v5e (and older) keeps 128.
    if any(g in kind for g in ("v2", "v3", "v4", "v5")):
        return 128
    return 256 if kind else 128


class GraphConvPrepared(NamedTuple):
    w_cat: jax.Array        # (Cin, 2*cout_pad)  mxu dtype, BN scale folded
    adj_big: jax.Array      # (M, M)             mxu dtype, kron(I_TB, A_off)
    diag_big: jax.Array     # (M, 1)             f32, tiled diag(A)
    shift: jax.Array        # (1, cout_pad)      f32, BN shift + bias*scale
    n_nodes: int
    n_pad: int
    cin: int
    cout: int
    cout_pad: int
    tb: int                 # graphs folded into one batch tile
    mxu_dtype: Any
    out_dtype: Any


def prepare_graph_conv(w, e_vals, adj_mask, gc_bias,
                       bn_gamma, bn_beta, bn_mean, bn_var, eps=1e-5, *,
                       batch_hint=None, rows_target=None,
                       mxu_dtype=jnp.float32, out_dtype=jnp.float32):
    """Run-once parameter glue: adjacency softmax, BN/bias folding, padding,
    block-diagonal adjacency build.  Reuse the result for every forward call.

    mxu_dtype=jnp.bfloat16 is recommended on v6e/v7x (f32 accumulation is kept
    via preferred_element_type; the VPU epilogue stays f32).  Default f32 keeps
    tight test tolerances.
    """
    _, cin, cout = w.shape
    n = e_vals.shape[0]
    kind = _device_kind()
    if rows_target is None:
        rows_target = _default_rows_target(kind)

    # Learnable adjacency: e at masked positions, -9e15 elsewhere, row softmax.
    logits = jnp.where(adj_mask, e_vals.astype(jnp.float32), -9e15)
    adj_soft = jax.nn.softmax(logits, axis=1)
    adj_diag = jnp.diagonal(adj_soft)                           # (N,) = A o I
    adj_off = adj_soft * (1.0 - jnp.eye(n, dtype=jnp.float32))  # A o (1-I)

    # Fold BatchNorm1d (inference) and the gconv bias into weights / shift:
    #   (y + bias)*scale + shift0 == x@(W*scale) mixed by A + (shift0 + bias*scale)
    scale = bn_gamma / jnp.sqrt(bn_var + eps)
    shift = (bn_beta - bn_mean * scale) + gc_bias * scale

    # Lane-pad each Cout half to a multiple of 128 so the in-kernel h0/h1
    # slices are tile-aligned and the output stores are unmasked (dense vst).
    cout_pad = _round_up(cout, 128)
    pad_c = cout_pad - cout
    w0s = jnp.pad(w[0] * scale[None, :], ((0, 0), (0, pad_c)))
    w1s = jnp.pad(w[1] * scale[None, :], ((0, 0), (0, pad_c)))
    w_cat = jnp.concatenate([w0s, w1s], axis=1)              # (Cin, 2*cout_pad)
    shift_pad = jnp.pad(shift, (0, pad_c)).reshape(1, cout_pad).astype(jnp.float32)

    # Sublane-pad node rows (8 f32 / 16 if any bf16 block) so multi-tile grids
    # satisfy the (8,128)/(16,128) block divisibility rule for odd N.
    row_align = 8
    if jnp.dtype(mxu_dtype).itemsize < 4 or jnp.dtype(out_dtype).itemsize < 4:
        row_align = 16
    n_pad = _round_up(n, row_align)
    pad_n = n_pad - n
    adj_off = jnp.pad(adj_off, ((0, pad_n), (0, pad_n)))
    adj_diag = jnp.pad(adj_diag, (0, pad_n))

    # Batch tile: fold TB graphs into the MXU M dimension.  Cap M at 1024 rows
    # so the resident, double-buffered (M,M) adjacency stays well inside the
    # default scoped VMEM budget on every generation.
    tb = max(1, rows_target // n_pad)
    tb = min(tb, max(1, 1024 // n_pad))
    if batch_hint is not None and batch_hint > 0:
        tb = min(tb, batch_hint)
        if "v7" in kind and batch_hint >= 2:
            # Keep >=2 grid steps so the "parallel" axis shards across both TCs.
            tb = min(tb, max(1, batch_hint // 2))
    m = tb * n_pad

    adj_big = jnp.kron(jnp.eye(tb, dtype=jnp.float32), adj_off).astype(mxu_dtype)
    diag_big = jnp.tile(adj_diag, tb).reshape(m, 1).astype(jnp.float32)

    return GraphConvPrepared(
        w_cat=w_cat.astype(mxu_dtype), adj_big=adj_big, diag_big=diag_big,
        shift=shift_pad, n_nodes=n, n_pad=n_pad, cin=cin, cout=cout,
        cout_pad=cout_pad, tb=tb, mxu_dtype=mxu_dtype, out_dtype=out_dtype)


# --------------------------------------------------------------------------- #
# Hot path
# --------------------------------------------------------------------------- #
def graph_conv_apply(prep, x):
    """x: (B, N, Cin) -> (B, N, Cout); GraphConv + BN(eval) + ReLU."""
    b, n, cin = x.shape
    assert n == prep.n_nodes and cin == prep.cin
    tb, n_pad, cout_pad = prep.tb, prep.n_pad, prep.cout_pad
    m = tb * n_pad

    # Pad batch to a multiple of the tile size (padded graphs are all-zero and
    # sliced away below) and pad node rows to the sublane-aligned count.
    b_pad = _round_up(b, tb)
    xp = jnp.pad(x, ((0, b_pad - b), (0, n_pad - n), (0, 0)))
    xf = xp.reshape(b_pad * n_pad, cin).astype(prep.mxu_dtype)
    num_tiles = b_pad // tb

    # Advisory cost estimate so XLA schedules this small op sensibly.
    rows = b_pad * n_pad
    flops = int(2 * rows * cin * (2 * cout_pad)       # weight matmul
                + 2 * rows * m * cout_pad             # block-diag adjacency matmul
                + 4 * rows * cout_pad)                # VPU epilogue
    bytes_accessed = int(
        xf.size * xf.dtype.itemsize
        + prep.w_cat.size * prep.w_cat.dtype.itemsize
        + prep.adj_big.size * prep.adj_big.dtype.itemsize
        + prep.diag_big.size * 4 + prep.shift.size * 4
        + rows * cout_pad * jnp.dtype(prep.out_dtype).itemsize)

    # Parameter operands keep index_map -> (0, 0) so they stay resident across
    # grid steps.  (On newer JAX, pipeline_mode=pl.Buffered(1) on those specs
    # -- and Buffered(3) on the x spec for large B -- would halve the resident
    # footprint / deepen the input pipeline; omitted here to stay on the
    # broadly-supported BlockSpec surface.)
    grid_spec = pltpu.PrefetchScalarGridSpec(
        num_scalar_prefetch=0,
        grid=(num_tiles,),
        in_specs=[
            pl.BlockSpec((m, cin), lambda t: (t, 0)),             # x batch tile
            pl.BlockSpec((cin, 2 * cout_pad), lambda t: (0, 0)),  # W cat (resident)
            pl.BlockSpec((m, m), lambda t: (0, 0)),               # kron adjacency
            pl.BlockSpec((m, 1), lambda t: (0, 0)),               # diag(A) tiled
            pl.BlockSpec((1, cout_pad), lambda t: (0, 0)),        # BN shift + bias
        ],
        out_specs=pl.BlockSpec((m, cout_pad), lambda t: (t, 0)),
    )

    out2d = pl.pallas_call(
        _gconv_bn_relu_kernel,
        out_shape=jax.ShapeDtypeStruct((b_pad * n_pad, cout_pad), prep.out_dtype),
        grid_spec=grid_spec,
        compiler_params=pltpu.CompilerParams(
            dimension_semantics=("parallel",)),
        cost_estimate=pl.CostEstimate(flops=flops, transcendentals=0,
                                      bytes_accessed=bytes_accessed),
    )(xf, prep.w_cat, prep.adj_big, prep.diag_big, prep.shift)

    return out2d.reshape(b_pad, n_pad, cout_pad)[:b, :n, :prep.cout]


# --------------------------------------------------------------------------- #
# Pure-JAX reference (matches the PyTorch module in eval mode)
# --------------------------------------------------------------------------- #
def _reference(x, w, e_vals, adj_mask, gc_bias,
               bn_gamma, bn_beta, bn_mean, bn_var, eps=1e-5):
    N = x.shape[1]
    logits = jnp.where(adj_mask, e_vals, jnp.full((N, N), -9e15, jnp.float32))
    adj_soft = jax.nn.softmax(logits, axis=1)
    eye = jnp.eye(N, dtype=jnp.float32)
    h0 = jnp.einsum('bnc,cd->bnd', x, w[0])
    h1 = jnp.einsum('bnc,cd->bnd', x, w[1])
    y = (jnp.einsum('nm,bmd->bnd', adj_soft * eye, h0)
         + jnp.einsum('nm,bmd->bnd', adj_soft * (1.0 - eye), h1))
    y = y + gc_bias[None, None, :]
    y = (y - bn_mean[None, None, :]) / jnp.sqrt(bn_var + eps)[None, None, :]
    y = y * bn_gamma[None, None, :] + bn_beta[None, None, :]
    return jnp.maximum(y, 0.0)


if __name__ == "__main__":
    B, N, Cin, Cout = 2, 16, 32, 32

    key = jax.random.PRNGKey(0)
    k_x, k_w, k_e, k_b, k_g, k_beta, k_m, k_v = jax.random.split(key, 8)

    x = jax.random.normal(k_x, (B, N, Cin), dtype=jnp.float32)
    w = jax.random.normal(k_w, (2, Cin, Cout), dtype=jnp.float32) * 0.1
    e_vals = jax.random.normal(k_e, (N, N), dtype=jnp.float32)
    gc_bias = jax.random.normal(k_b, (Cout,), dtype=jnp.float32) * 0.05

    # Deterministic adjacency mask: ring graph + self loops.
    idx = jnp.arange(N)
    adj_mask = ((idx[:, None] == idx[None, :])
                | (idx[:, None] == (idx[None, :] + 1) % N)
                | (idx[:, None] == (idx[None, :] - 1) % N))

    # BatchNorm1d params / running stats (deterministic, nontrivial).
    bn_gamma = 1.0 + 0.1 * jax.random.normal(k_g, (Cout,), dtype=jnp.float32)
    bn_beta = 0.1 * jax.random.normal(k_beta, (Cout,), dtype=jnp.float32)
    bn_mean = 0.2 * jax.random.normal(k_m, (Cout,), dtype=jnp.float32)
    bn_var = jnp.abs(jax.random.normal(k_v, (Cout,), dtype=jnp.float32)) + 0.5

    ref = _reference(x, w, e_vals, adj_mask, gc_bias,
                     bn_gamma, bn_beta, bn_mean, bn_var)

    # f32 MXU path (tight tolerance).  Parameter glue runs once in prepare().
    prep = prepare_graph_conv(w, e_vals, adj_mask, gc_bias,
                              bn_gamma, bn_beta, bn_mean, bn_var,
                              batch_hint=B)
    out = jax.block_until_ready(graph_conv_apply(prep, x))
    assert out.shape == (B, N, Cout)
    assert jnp.allclose(out, ref, atol=1e-4, rtol=1e-4), "f32 mismatch vs reference"

    # bf16 MXU operands (recommended on v6e/v7x); f32 accumulation + epilogue.
    prep_bf16 = prepare_graph_conv(w, e_vals, adj_mask, gc_bias,
                                   bn_gamma, bn_beta, bn_mean, bn_var,
                                   batch_hint=B, mxu_dtype=jnp.bfloat16)
    out_bf16 = jax.block_until_ready(graph_conv_apply(prep_bf16, x))
    assert out_bf16.shape == (B, N, Cout)
    assert jnp.allclose(out_bf16, ref, atol=1.5e-1, rtol=5e-2), \
        "bf16 mismatch vs reference (loose tolerance)"

    print("KERNEL_OK")
</pallas_src>

<mosaic_0001>
module attributes {stable_mosaic.version = 11 : i64} {
  func.func @_gconv_bn_relu_kernel(%arg0: i32, %arg1: memref<32x32xf32, #tpu.memory_space<vmem>>, %arg2: memref<32x256xf32, #tpu.memory_space<vmem>>, %arg3: memref<32x32xf32, #tpu.memory_space<vmem>>, %arg4: memref<32x1xf32, #tpu.memory_space<vmem>>, %arg5: memref<1x128xf32, #tpu.memory_space<vmem>>, %arg6: memref<32x128xf32, #tpu.memory_space<vmem>>) attributes {dimension_semantics = [#tpu.dimension_semantics<parallel>], iteration_bounds = array<i64: 1>, scalar_prefetch = 0 : i64, scratch_operands = 0 : i64, tpu.core_type = #tpu.core_type<tc>, window_params = [{transform_indices = @transform_0, window_bounds = array<i64: 32, 32>}, {pipeline_mode = #tpu.pipeline_mode<synchronous>, transform_indices = @transform_1, window_bounds = array<i64: 32, 256>}, {pipeline_mode = #tpu.pipeline_mode<synchronous>, transform_indices = @transform_2, window_bounds = array<i64: 32, 32>}, {pipeline_mode = #tpu.pipeline_mode<synchronous>, transform_indices = @transform_3, window_bounds = array<i64: 32, 1>}, {pipeline_mode = #tpu.pipeline_mode<synchronous>, transform_indices = @transform_4, window_bounds = array<i64: 1, 128>}, {transform_indices = @transform_5, window_bounds = array<i64: 32, 128>}]} {
    %c0 = arith.constant 0 : index
    %c0_0 = arith.constant 0 : index
    %0 = vector.load %arg1[%c0, %c0_0] : memref<32x32xf32, #tpu.memory_space<vmem>>, vector<32x32xf32>
    %c0_1 = arith.constant 0 : index
    %c0_2 = arith.constant 0 : index
    %1 = vector.load %arg2[%c0_1, %c0_2] : memref<32x256xf32, #tpu.memory_space<vmem>>, vector<32x256xf32>
    %cst = arith.constant dense<0.000000e+00> : vector<32x256xf32>
    %2 = tpu.matmul %0, %1, %cst {dimension_numbers = #tpu.dot_dimension_numbers<[1], [0], [0], [1], [0, 0, 1, 1], [], []>} : vector<32x32xf32>, vector<32x256xf32>, vector<32x256xf32> -> vector<32x256xf32>
    %3 = vector.extract_strided_slice %2 {offsets = [0, 0], sizes = [32, 128], strides = [1, 1]} : vector<32x256xf32> to vector<32x128xf32>
    %4 = vector.extract_strided_slice %2 {offsets = [0, 128], sizes = [32, 128], strides = [1, 1]} : vector<32x256xf32> to vector<32x128xf32>
    %c0_3 = arith.constant 0 : index
    %c0_4 = arith.constant 0 : index
    %5 = vector.load %arg4[%c0_3, %c0_4] : memref<32x1xf32, #tpu.memory_space<vmem>>, vector<32x1xf32>
    %6 = vector.broadcast %5 : vector<32x1xf32> to vector<32x128xf32>
    %7 = arith.mulf %6, %3 : vector<32x128xf32>
    %c0_5 = arith.constant 0 : index
    %c0_6 = arith.constant 0 : index
    %8 = vector.load %arg3[%c0_5, %c0_6] : memref<32x32xf32, #tpu.memory_space<vmem>>, vector<32x32xf32>
    %cst_7 = arith.constant dense<0.000000e+00> : vector<32x128xf32>
    %9 = tpu.matmul %8, %4, %cst_7 {dimension_numbers = #tpu.dot_dimension_numbers<[1], [0], [0], [1], [0, 0, 1, 1], [], []>} : vector<32x32xf32>, vector<32x128xf32>, vector<32x128xf32> -> vector<32x128xf32>
    %10 = arith.addf %7, %9 : vector<32x128xf32>
    %c0_8 = arith.constant 0 : index
    %c0_9 = arith.constant 0 : index
    %11 = vector.load %arg5[%c0_8, %c0_9] : memref<1x128xf32, #tpu.memory_space<vmem>>, vector<1x128xf32>
    %12 = vector.broadcast %11 : vector<1x128xf32> to vector<32x128xf32>
    %13 = arith.addf %10, %12 : vector<32x128xf32>
    %cst_10 = arith.constant 0.000000e+00 : f32
    %14 = vector.broadcast %cst_10 : f32 to vector<32x128xf32>
    %15 = arith.maximumf %13, %14 : vector<32x128xf32>
    %c0_11 = arith.constant 0 : index
    %c0_12 = arith.constant 0 : index
    %16 = vector.load %arg6[%c0_11, %c0_12] : memref<32x128xf32, #tpu.memory_space<vmem>>, vector<32x128xf32>
    tpu.vector_store %arg6[%c0_11, %c0_12], %15 {strides = array<i32>} : memref<32x128xf32, #tpu.memory_space<vmem>>, vector<32x128xf32>,
    return
  }
  func.func @transform_0(%arg0: i32) -> (i32, i32) {
    %c0_i32 = arith.constant 0 : i32
    %c0_i32_0 = arith.constant 0 : i32
    return %arg0, %c0_i32 : i32, i32
  }
  func.func @transform_1(%arg0: i32) -> (i32, i32) {
    %c0_i32 = arith.constant 0 : i32
    %c0_i32_0 = arith.constant 0 : i32
    %c0_i32_1 = arith.constant 0 : i32
    return %c0_i32, %c0_i32_0 : i32, i32
  }
  func.func @transform_2(%arg0: i32) -> (i32, i32) {
    %c0_i32 = arith.constant 0 : i32
    %c0_i32_0 = arith.constant 0 : i32
    %c0_i32_1 = arith.constant 0 : i32
    return %c0_i32, %c0_i32_0 : i32, i32
  }
  func.func @transform_3(%arg0: i32) -> (i32, i32) {
    %c0_i32 = arith.constant 0 : i32
    %c0_i32_0 = arith.constant 0 : i32
    %c0_i32_1 = arith.constant 0 : i32
    return %c0_i32, %c0_i32_0 : i32, i32
  }
  func.func @transform_4(%arg0: i32) -> (i32, i32) {
    %c0_i32 = arith.constant 0 : i32
    %c0_i32_0 = arith.constant 0 : i32
    %c0_i32_1 = arith.constant 0 : i32
    return %c0_i32, %c0_i32_0 : i32, i32
  }
  func.func @transform_5(%arg0: i32) -> (i32, i32) {
    %c0_i32 = arith.constant 0 : i32
    %c0_i32_0 = arith.constant 0 : i32
    return %arg0, %c0_i32 : i32, i32
  }
}

</mosaic_0001>

<llo_original>
// kernel: tpu_custom_call.1
$region0: #{tpu_custom_call.1}
  #allocation0 [shape = 'u32[]', space=smem, size = 0x4, offset = 0x4, fixed_abs, tag = 'smem constant byte address 0x4 - core index']
  #allocation1 [shape = 'u32[72,128]{1,0:T(1,128)}', space=vmem, size = 0x9000, scoped, tag = 'internal scratch']
  %s0 = inlined_call_operand.vmem [shape: f32[32,32], index: 0, kind: input, shape index: {}]
  %s1 = inlined_call_operand.hbm [shape: f32[32,256], index: 1, kind: input, shape index: {}]
  %s2 = inlined_call_operand.hbm [shape: f32[32,32], index: 2, kind: input, shape index: {}]
  %s3 = inlined_call_operand.vmem [shape: f32[32,1], index: 3, kind: input, shape index: {}]
  %s4 = inlined_call_operand.vmem [shape: f32[1,128], index: 4, kind: input, shape index: {}]
  %s5 = inlined_call_operand.hbm [shape: f32[32,128], index: 5, kind: output, shape index: {}]
  %s6 = sld [smem:[#allocation0]]
  $region38: #{tpu_custom_call.1} parent=0
    _
  %s8 = ssub.s32 1, %s6
  %s9 = scalar_select 0, %s8, %s6
  $region1: #{tpu_custom_call.1} parent=0
    #allocation2 [shape = 'u8[32768]{0}', space=vmem, size = 0x8000, scoped, tag = 'input window, operand 1, single buffered']
    #allocation3 [shape = 's32[1]{0}', space=sflag, size = 0x4, scoped, tag = 'scoped memory for tpu_custom_call.1']
    #allocation4 [shape = 's32[1]{0}', space=sflag, size = 0x4, scoped, tag = 'scoped memory for tpu_custom_call.1']
    #allocation5 [shape = 'u8[16384]{0}', space=vmem, size = 0x4000, scoped, tag = 'input window, operand 2, single buffered']
    #allocation6 [shape = 's32[1]{0}', space=sflag, size = 0x4, scoped, tag = 'scoped memory for tpu_custom_call.1']
    #allocation7 [shape = 'u8[16384]{0}', space=vmem, size = 0x4000, scoped, tag = 'output window, operand 0, single buffered']
    %10 = vsyncpa [#allocation3], 0
    %11 = vsyncpa [#allocation6], 0
    %12 = vsyncpa [#allocation4], 0
    // Predicated region
    $region2: #{tpu_custom_call.1} parent=1 // pred_check
      _
    $region3: #{tpu_custom_call.1} parent=1 // pred_check_branch
      %14 = sbr.rel (0) target = $region5
    $region4: #{tpu_custom_call.1} parent=1 // pred_region
      _
    $region5: #{tpu_custom_call.1} parent=1 // pred_fallthru
      _
    // Predicated region
    $region6: #{tpu_custom_call.1} parent=1 // pred_check
      _
    $region7: #{tpu_custom_call.1} parent=1 // pred_check_branch
      %16 = sbr.rel (0) target = $region9
    $region8: #{tpu_custom_call.1} parent=1 // pred_region
      %18 = vsyncadd [#allocation3], 0
      %s19 = sshll.u32 %s1, 4
      %s20 = int_to_ptr.hbm [resolvable:$true] %s19
      %s21 = sshll.u32 [#allocation2], 4
      %s22 = int_to_ptr.vmem [resolvable:$true] %s21
      %27 = dma.hbm_to_vmem [thread:$0]  %s20, 1024, %s22, [#allocation3], 256, 256, 16
    $region9: #{tpu_custom_call.1} parent=1 // pred_fallthru
      _
    // Predicated region
    $region10: #{tpu_custom_call.1} parent=1 // pred_check
      _
    $region11: #{tpu_custom_call.1} parent=1 // pred_check_branch
      %29 = sbr.rel (0) target = $region13
    $region12: #{tpu_custom_call.1} parent=1 // pred_region
      %31 = vsyncadd [#allocation6], 0
      %s32 = sshll.u32 %s2, 4
      %s33 = int_to_ptr.hbm [resolvable:$true] %s32
      %s34 = sshll.u32 [#allocation5], 4
      %s35 = int_to_ptr.vmem [resolvable:$true] %s34
      %40 = dma.hbm_to_vmem [thread:$0]  %s33, 512, %s35, [#allocation6], 128, 128, 8
    $region13: #{tpu_custom_call.1} parent=1 // pred_fallthru
      _
    // Predicated region
    $region14: #{tpu_custom_call.1} parent=1 // pred_check
      _
    $region15: #{tpu_custom_call.1} parent=1 // pred_check_branch
      %42 = sbr.rel (0) target = $region17
    $region16: #{tpu_custom_call.1} parent=1 // pred_region
      _
    $region17: #{tpu_custom_call.1} parent=1 // pred_fallthru
      _
    // Predicated region
    $region18: #{tpu_custom_call.1} parent=1 // pred_check
      _
    $region19: #{tpu_custom_call.1} parent=1 // pred_check_branch
      %44 = sbr.rel (0) target = $region21
    $region20: #{tpu_custom_call.1} parent=1 // pred_region
      _
    $region21: #{tpu_custom_call.1} parent=1 // pred_fallthru
      _
    // Predicated region
    $region22: #{tpu_custom_call.1} parent=1 // pred_check
      _
    $region23: #{tpu_custom_call.1} parent=1 // pred_check_branch
      %46 = sbr.rel (0) target = $region25
    $region24: #{tpu_custom_call.1} parent=1 // pred_region
      %48 = dma.done [#allocation3], 1024
    $region25: #{tpu_custom_call.1} parent=1 // pred_fallthru
      _
    // Predicated region
    $region26: #{tpu_custom_call.1} parent=1 // pred_check
      _
    $region27: #{tpu_custom_call.1} parent=1 // pred_check_branch
      %50 = sbr.rel (0) target = $region29
    $region28: #{tpu_custom_call.1} parent=1 // pred_region
      %52 = dma.done [#allocation6], 512
    $region29: #{tpu_custom_call.1} parent=1 // pred_fallthru
      _
    %v53 = vld [vmem:[%s0] sm:$0xff]
    %v54 = vld [vmem:[%s0 + $0x8] sm:$0xff]
    %v55 = vld [vmem:[%s0 + $0x10] sm:$0xff]
    %v56 = vld [vmem:[%s0 + $0x18] sm:$0xff]
    %v57 = vld [vmem:[#allocation2] sm:$0xff]
    %v58 = vld [vmem:[#allocation2 + $0x8] sm:$0xff]
    %v59 = vld [vmem:[#allocation2 + $0x10] sm:$0xff]
    %v60 = vld [vmem:[#allocation2 + $0x18] sm:$0xff]
    %v61 = vld [vmem:[#allocation2 + $0x20] sm:$0xff]
    %v62 = vld [vmem:[#allocation2 + $0x28] sm:$0xff]
    %v63 = vld [vmem:[#allocation2 + $0x30] sm:$0xff]
    %v64 = vld [vmem:[#allocation2 + $0x38] sm:$0xff]
    %vm65 = vcmask 261120
    %v67 = vsel %vm65, %v53, 0
    %v70 = vsel %vm65, %v54, 0
    %v73 = vsel %vm65, %v55, 0
    %v76 = vsel %vm65, %v56, 0
    %78 = vmatpush.msra.mxu0 0.0
    %79 = vmatpush.msra.mxu0 0.0
    %80 = vmatpush.msra.mxu0 0.0
    %81 = vmatpush.msra.mxu0 0.0
    %82 = vmatpush.msra.mxu0 0.0
    %83 = vmatpush.msra.mxu0 0.0
    %84 = vmatpush.msra.mxu0 0.0
    %85 = vmatpush.msra.mxu0 0.0
    %86 = vmatpush.msra.mxu0 0.0
    %87 = vmatpush.msra.mxu0 0.0
    %88 = vmatpush.msra.mxu0 0.0
    %89 = vmatpush.msra.mxu0 0.0
    %90 = vmatpush.msra.mxu0 %v63
    %91 = vmatpush.msra.mxu0 %v61
    %92 = vmatpush.msra.mxu0 %v59
    %93 = vmatpush.msra.mxu0 %v57
    %94 = vmatmul.f32.gmra.mxu0 %v67
    %v95 = vpop.f32.mrf.mxu0
    %v96 = vadd.f32 0.0, %v95
    %97 = vmatmul.f32.gmra.mxu0 %v70
    %v98 = vpop.f32.mrf.mxu0
    %v99 = vadd.f32 0.0, %v98
    %100 = vmatmul.f32.gmra.mxu0 %v73
    %v101 = vpop.f32.mrf.mxu0
    %v102 = vadd.f32 0.0, %v101
    %103 = vmatmul.f32.gmra.mxu0 %v76
    %v104 = vpop.f32.mrf.mxu0
    %v105 = vadd.f32 0.0, %v104
    %106 = vdwg.mxu0
    %107 = vmatpush.msra.mxu0 0.0
    %108 = vmatpush.msra.mxu0 0.0
    %109 = vmatpush.msra.mxu0 0.0
    %110 = vmatpush.msra.mxu0 0.0
    %111 = vmatpush.msra.mxu0 0.0
    %112 = vmatpush.msra.mxu0 0.0
    %113 = vmatpush.msra.mxu0 0.0
    %114 = vmatpush.msra.mxu0 0.0
    %115 = vmatpush.msra.mxu0 0.0
    %116 = vmatpush.msra.mxu0 0.0
    %117 = vmatpush.msra.mxu0 0.0
    %118 = vmatpush.msra.mxu0 0.0
    %119 = vmatpush.msra.mxu0 %v64
    %120 = vmatpush.msra.mxu0 %v62
    %121 = vmatpush.msra.mxu0 %v60
    %122 = vmatpush.msra.mxu0 %v58
    %123 = vmatmul.f32.gmra.mxu0 %v67
    %v124 = vpop.f32.mrf.mxu0
    %v125 = vadd.f32 0.0, %v124
    %126 = vmatmul.f32.gmra.mxu0 %v70
    %v127 = vpop.f32.mrf.mxu0
    %v128 = vadd.f32 0.0, %v127
    %129 = vmatmul.f32.gmra.mxu0 %v73
    %v130 = vpop.f32.mrf.mxu0
    %v131 = vadd.f32 0.0, %v130
    %132 = vmatmul.f32.gmra.mxu0 %v76
    %v133 = vpop.f32.mrf.mxu0
    %v134 = vadd.f32 0.0, %v133
    %135 = vdwg.mxu0
    %v136 = vld [vmem:[%s3] sm:$0xff]
    %v137 = vld [vmem:[%s3 + $0x8] sm:$0xff]
    %v138 = vld [vmem:[%s3 + $0x10] sm:$0xff]
    %v139 = vld [vmem:[%s3 + $0x18] sm:$0xff]
    %141 = vset.pattern.permute.xlu0 0
    %142 = vperm.xlu0 %141, %v136
    %v143 = vpop.permute.xlu0 %142
    %146 = vset.pattern.permute.xlu0 0
    %147 = vperm.xlu0 %146, %v137
    %v148 = vpop.permute.xlu0 %147
    %151 = vset.pattern.permute.xlu0 0
    %152 = vperm.xlu0 %151, %v138
    %v153 = vpop.permute.xlu0 %152
    %156 = vset.pattern.permute.xlu0 0
    %157 = vperm.xlu0 %156, %v139
    %v158 = vpop.permute.xlu0 %157
    %v160 = vmul.f32 %v143, %v96
    %v161 = vmul.f32 %v148, %v99
    %v162 = vmul.f32 %v153, %v102
    %v163 = vmul.f32 %v158, %v105
    %v164 = vld [vmem:[#allocation5] sm:$0xff]
    %v165 = vld [vmem:[#allocation5 + $0x8] sm:$0xff]
    %v166 = vld [vmem:[#allocation5 + $0x10] sm:$0xff]
    %v167 = vld [vmem:[#allocation5 + $0x18] sm:$0xff]
    %v169 = vsel %vm65, %v164, 0
    %v172 = vsel %vm65, %v165, 0
    %v175 = vsel %vm65, %v166, 0
    %v178 = vsel %vm65, %v167, 0
    %180 = vmatpush.msra.mxu0 0.0
    %181 = vmatpush.msra.mxu0 0.0
    %182 = vmatpush.msra.mxu0 0.0
    %183 = vmatpush.msra.mxu0 0.0
    %184 = vmatpush.msra.mxu0 0.0
    %185 = vmatpush.msra.mxu0 0.0
    %186 = vmatpush.msra.mxu0 0.0
    %187 = vmatpush.msra.mxu0 0.0
    %188 = vmatpush.msra.mxu0 0.0
    %189 = vmatpush.msra.mxu0 0.0
    %190 = vmatpush.msra.mxu0 0.0
    %191 = vmatpush.msra.mxu0 0.0
    %192 = vmatpush.msra.mxu0 %v134
    %193 = vmatpush.msra.mxu0 %v131
    %194 = vmatpush.msra.mxu0 %v128
    %195 = vmatpush.msra.mxu0 %v125
    %196 = vmatmul.f32.gmra.mxu0 %v169
    %v197 = vpop.f32.mrf.mxu0
    %v198 = vadd.f32 0.0, %v197
    %199 = vmatmul.f32.gmra.mxu0 %v172
    %v200 = vpop.f32.mrf.mxu0
    %v201 = vadd.f32 0.0, %v200
    %202 = vmatmul.f32.gmra.mxu0 %v175
    %v203 = vpop.f32.mrf.mxu0
    %v204 = vadd.f32 0.0, %v203
    %205 = vmatmul.f32.gmra.mxu0 %v178
    %v206 = vpop.f32.mrf.mxu0
    %v207 = vadd.f32 0.0, %v206
    %208 = vdwg.mxu0
    %v209 = vadd.f32 %v160, %v198
    %v210 = vadd.f32 %v161, %v201
    %v211 = vadd.f32 %v162, %v204
    %v212 = vadd.f32 %v163, %v207
    %v213 = vld [vmem:[%s4] sm:$0x1]
    %v215 = vperm.slane %v213, 0
    %v217 = vadd.f32 %v209, %v215
    %v218 = vadd.f32 %v210, %v215
    %v219 = vadd.f32 %v211, %v215
    %v220 = vadd.f32 %v212, %v215
    %v221 = vmax.f32 %v217, 0.0
    %v222 = vmax.f32 %v218, 0.0
    %v223 = vmax.f32 %v219, 0.0
    %v224 = vmax.f32 %v220, 0.0
    %225 = vst [vmem:[#allocation7] sm:$0xff] %v221
    %226 = vst [vmem:[#allocation7 + $0x8] sm:$0xff] %v222
    %227 = vst [vmem:[#allocation7 + $0x10] sm:$0xff] %v223
    %228 = vst [vmem:[#allocation7 + $0x18] sm:$0xff] %v224
    // Predicated region
    $region30: #{tpu_custom_call.1} parent=1 // pred_check
      _
    $region31: #{tpu_custom_call.1} parent=1 // pred_check_branch
      %230 = sbr.rel (0) target = $region33
    $region32: #{tpu_custom_call.1} parent=1 // pred_region
      %232 = vsyncadd [#allocation4], 0
      %s233 = sshll.u32 [#allocation7], 4
      %s234 = int_to_ptr.vmem [resolvable:$true] %s233
      %s235 = sshll.u32 %s5, 4
      %s236 = int_to_ptr.hbm [resolvable:$true] %s235
      %241 = dma.vmem_to_hbm [thread:$0]  %s234, 512, %s236, [#allocation4], 128, 128, 8
    $region33: #{tpu_custom_call.1} parent=1 // pred_fallthru
      _
    // Predicated region
    $region34: #{tpu_custom_call.1} parent=1 // pred_check
      _
    $region35: #{tpu_custom_call.1} parent=1 // pred_check_branch
      %243 = sbr.rel (0) target = $region37
    $region36: #{tpu_custom_call.1} parent=1 // pred_region
      %245 = dma.done [#allocation4], 512
    $region37: #{tpu_custom_call.1} parent=1 // pred_fallthru
      _
    %246 = vsyncpa [#allocation3], 1
    %247 = vsyncpa [#allocation6], 1
    %248 = vsyncpa [#allocation4], 1

</llo_original>
